<compile_context>
chip_gen: v7x
topology: tpu7x:2x2x1
jax: 0.10.0
libtpu: 0.0.40
codegen_flags: <defaults>
</compile_context>

<pallas_src>
import jax
import jax.numpy as jnp
from jax.experimental import pallas as pl
from jax.experimental.pallas import tpu as pltpu


# ---------------------------------------------------------------------------
# Model dimensions (match the PyTorch module defaults)
# ---------------------------------------------------------------------------
Z_DIM = 2
N_LABELS = 8
N_SHARED = 3
N_OTHER = 4
D_IN = N_SHARED + N_OTHER                 # 7
D_OUT = N_SHARED + N_LABELS * N_OTHER     # 35
HIDDEN = 32
TILE_B = 8                                # samples per grid step (one "forward call")

# --- packed activation slab: (TOTAL_B, XE_COLS), x | eps ---
COL_X = 0
COL_EPS = 8
XE_COLS = 16

# --- per-head slab layout: (N_LABELS, HEAD_ROWS, HIDDEN) ---
ROW_WE1 = 0                               # rows [0, 7)   : We1[h]  (D_IN, H)
ROW_BE1 = D_IN                            # row  7        : be1[h]  (H,)
ROW_WD1 = D_IN + 1                        # rows [8, 10)  : Wd1[h]  (Z_DIM, H)
ROW_BD1 = D_IN + 1 + Z_DIM                # row  10       : bd1[h]  (H,)
HEAD_ROWS = 16                            # padded to 2 sublane tiles

# --- shared slab layout: (4 * BAND, 128), 40-row bands ---
BAND = 40
SHARED_COLS = 128                         # lane-dense; last band is the output band
SHARED_ROWS = 4 * BAND                    # 160
ROW_WE2, ROW_BE2 = 0, HIDDEN                                   # band 0
ROW_WMV, ROW_BMV = BAND, BAND + HIDDEN                         # band 1 (fused mu|var)
ROW_WD2, ROW_BD2 = 2 * BAND, 2 * BAND + HIDDEN                 # band 2
ROW_WD3, ROW_BD3 = 3 * BAND, 3 * BAND + HIDDEN                 # band 3 (128-wide)
ROW_PLACE = ROW_BD3 + 1                   # rows 153:157 : placement matrix P (4,128)

# --- packed, lane-dense output slab: (TOTAL_B, 128) ---
COL_PRED = 0                              # cols [0, 35)   : predicted
COL_MUVAR = 64                            # cols [64, 68)  : z_mu | z_var
OUT_COLS = 128


# ---------------------------------------------------------------------------
# Pallas kernel: full VAE forward (encoder -> reparam -> decoder), one block
# of TILE_B samples per grid step.
# ---------------------------------------------------------------------------
def vae_fwd_kernel(head_ids_ref,           # scalar prefetch (SMEM) - drives index_maps
                   xe_ref,                 # (TILE_B, XE_COLS)   x | eps
                   head_ref,               # (HEAD_ROWS, HIDDEN) selected head's slab
                   shared_ref,             # (SHARED_ROWS, SHARED_COLS)
                   out_ref):               # (TILE_B, OUT_COLS)
    del head_ids_ref  # head selection already applied via the BlockSpec index_map
    bf16 = jnp.bfloat16
    f32 = jnp.float32

    xe = xe_ref[...]                               # (TILE_B, 16) f32
    x = xe[:, COL_X:COL_X + D_IN]                  # (TILE_B, 7)
    eps = xe[:, COL_EPS:COL_EPS + Z_DIM]           # (TILE_B, 2)
    head = head_ref[...]                           # (HEAD_ROWS, HIDDEN)

    # ---------------- encoder layer 1 (K = D_IN = 7): one MXU dot, bf16 operands
    we1 = head[ROW_WE1:ROW_WE1 + D_IN, :].astype(bf16)
    be1 = head[ROW_BE1:ROW_BE1 + 1, :]
    h = jnp.dot(x.astype(bf16), we1, preferred_element_type=f32) + be1
    h = jnp.maximum(h, 0.0)

    # ---------------- encoder layer 2: MXU (32x32)
    we2 = shared_ref[ROW_WE2:ROW_WE2 + HIDDEN, 0:HIDDEN].astype(bf16)
    be2 = shared_ref[ROW_BE2:ROW_BE2 + 1, 0:HIDDEN]
    h = jnp.maximum(
        jnp.dot(h.astype(bf16), we2, preferred_element_type=f32) + be2, 0.0)

    # ---------------- fused mu/var head: one MXU matmul, N = 2*Z_DIM
    wmv = shared_ref[ROW_WMV:ROW_WMV + HIDDEN, 0:2 * Z_DIM].astype(bf16)
    bmv = shared_ref[ROW_BMV:ROW_BMV + 1, 0:2 * Z_DIM]
    muvar = jnp.dot(h.astype(bf16), wmv, preferred_element_type=f32) + bmv
    z_mu = muvar[:, 0:Z_DIM]
    z_var = muvar[:, Z_DIM:2 * Z_DIM]

    # ---------------- reparameterisation (training mode): z = mu + eps*exp(0.5*var)
    z = z_mu + eps * jnp.exp(0.5 * z_var)

    # ---------------- decoder layer 1 (K = Z_DIM = 2): depth-2 f32 VPU FMA
    d = (head[ROW_BD1:ROW_BD1 + 1, :]
         + z[:, 0:1] * head[ROW_WD1:ROW_WD1 + 1, :]
         + z[:, 1:2] * head[ROW_WD1 + 1:ROW_WD1 + 2, :])
    d = jnp.maximum(d, 0.0)

    # ---------------- decoder layer 2: MXU (32x32)
    wd2 = shared_ref[ROW_WD2:ROW_WD2 + HIDDEN, 0:HIDDEN].astype(bf16)
    bd2 = shared_ref[ROW_BD2:ROW_BD2 + 1, 0:HIDDEN]
    d = jnp.maximum(
        jnp.dot(d.astype(bf16), wd2, preferred_element_type=f32) + bd2, 0.0)

    # ---------------- output band: one 128-lane-wide row, assembled on the MXU.
    # pred lands in cols [0,35) via the pre-padded Wd3/bd3; mu|var land in cols
    # [64,68) via the 0/1 placement matrix P.  Single unmasked full-width store.
    wd3p = shared_ref[ROW_WD3:ROW_WD3 + HIDDEN, :].astype(bf16)     # (32, 128)
    bd3p = shared_ref[ROW_BD3:ROW_BD3 + 1, :]                       # (1, 128)
    pmat = shared_ref[ROW_PLACE:ROW_PLACE + 2 * Z_DIM, :]           # (4, 128) f32
    out_row = (jnp.dot(d.astype(bf16), wd3p, preferred_element_type=f32)
               + bd3p
               + jnp.dot(muvar, pmat, preferred_element_type=f32))
    out_ref[...] = out_row


# ---------------------------------------------------------------------------
# Wrappers
# ---------------------------------------------------------------------------
@jax.jit
def vae_forward_blocks(xe, head_ids, head_slab, shared_slab):
    """Fused forward for num_blocks independent VAE calls of TILE_B samples each.

    xe:       (num_blocks * TILE_B, XE_COLS)  packed x|eps activation slab
    head_ids: (num_blocks,) int32             one head per block of TILE_B rows
    Returns the (TOTAL_B, OUT_COLS) packed output slab.
    """
    total_b = xe.shape[0]
    num_blocks = total_b // TILE_B
    head_ids = jnp.clip(head_ids.astype(jnp.int32), 0, N_LABELS - 1)

    grid_spec = pltpu.PrefetchScalarGridSpec(
        num_scalar_prefetch=1,
        grid=(num_blocks,),
        in_specs=[
            # activation block for this step
            pl.BlockSpec((TILE_B, XE_COLS), lambda i, heads: (i, 0)),
            # per-head packed slab, selected via the prefetched head id
            pl.BlockSpec((pl.Squeezed(), HEAD_ROWS, HIDDEN),
                         lambda i, heads: (heads[i], 0, 0)),
            # shared slab: constant block index -> DMA'd once, stays resident
            pl.BlockSpec((SHARED_ROWS, SHARED_COLS), lambda i, heads: (0, 0)),
        ],
        out_specs=pl.BlockSpec((TILE_B, OUT_COLS), lambda i, heads: (i, 0)),
    )

    return pl.pallas_call(
        vae_fwd_kernel,
        out_shape=jax.ShapeDtypeStruct((total_b, OUT_COLS), jnp.float32),
        grid_spec=grid_spec,
        compiler_params=pltpu.CompilerParams(
            dimension_semantics=("parallel",)),   # uses both TCs on v7x
    )(head_ids, xe, head_slab, shared_slab)


def pack_activations(x, eps, pad=0):
    """Pack x (B, D_IN) and eps (B, Z_DIM) into one (B+pad, XE_COLS) slab."""
    b = x.shape[0]
    xe = jnp.zeros((b + pad, XE_COLS), jnp.float32)
    xe = xe.at[:b, COL_X:COL_X + D_IN].set(x.astype(jnp.float32))
    xe = xe.at[:b, COL_EPS:COL_EPS + Z_DIM].set(eps.astype(jnp.float32))
    return xe


def unpack_outputs(out, b):
    pred = out[:b, COL_PRED:COL_PRED + D_OUT]
    z_mu = out[:b, COL_MUVAR:COL_MUVAR + Z_DIM]
    z_var = out[:b, COL_MUVAR + Z_DIM:COL_MUVAR + 2 * Z_DIM]
    return pred, z_mu, z_var


def vae_forward(x, eps, head_id, head_slab, shared_slab):
    """Single VAE forward call (one head_id for the whole batch), matching the
    PyTorch module's forward(x, head_id) -> (predicted, z_mu, z_var)."""
    b = x.shape[0]
    pad = (-b) % TILE_B
    xe = pack_activations(x, eps, pad)
    num_blocks = (b + pad) // TILE_B
    head_ids = jnp.full((num_blocks,), int(head_id), jnp.int32)
    out = vae_forward_blocks(xe, head_ids, head_slab, shared_slab)
    return unpack_outputs(out, b)


# ---------------------------------------------------------------------------
# Parameter init (synthetic, deterministic) + packing into the two slabs
# ---------------------------------------------------------------------------
def init_params(key):
    ks = jax.random.split(key, 14)
    s = 0.1
    we1 = s * jax.random.normal(ks[0], (N_LABELS, D_IN, HIDDEN), jnp.float32)
    be1 = s * jax.random.normal(ks[1], (N_LABELS, HIDDEN), jnp.float32)
    we2 = s * jax.random.normal(ks[2], (HIDDEN, HIDDEN), jnp.float32)
    be2 = s * jax.random.normal(ks[3], (1, HIDDEN), jnp.float32)
    wmu = s * jax.random.normal(ks[4], (HIDDEN, Z_DIM), jnp.float32)
    bmu = s * jax.random.normal(ks[5], (1, Z_DIM), jnp.float32)
    wvar = s * jax.random.normal(ks[6], (HIDDEN, Z_DIM), jnp.float32)
    bvar = s * jax.random.normal(ks[7], (1, Z_DIM), jnp.float32)
    wd1 = s * jax.random.normal(ks[8], (N_LABELS, Z_DIM, HIDDEN), jnp.float32)
    bd1 = s * jax.random.normal(ks[9], (N_LABELS, HIDDEN), jnp.float32)
    wd2 = s * jax.random.normal(ks[10], (HIDDEN, HIDDEN), jnp.float32)
    bd2 = s * jax.random.normal(ks[11], (1, HIDDEN), jnp.float32)
    wd3 = s * jax.random.normal(ks[12], (HIDDEN, D_OUT), jnp.float32)
    bd3 = s * jax.random.normal(ks[13], (1, D_OUT), jnp.float32)
    return (we1, be1, we2, be2, wmu, bmu, wvar, bvar,
            wd1, bd1, wd2, bd2, wd3, bd3)


def pack_params(params):
    """One-time packing of the 16 parameter arrays into two contiguous slabs."""
    (we1, be1, we2, be2, wmu, bmu, wvar, bvar,
     wd1, bd1, wd2, bd2, wd3, bd3) = params

    # Per-head slab: (N_LABELS, HEAD_ROWS, HIDDEN)
    head = jnp.zeros((N_LABELS, HEAD_ROWS, HIDDEN), jnp.float32)
    head = head.at[:, ROW_WE1:ROW_WE1 + D_IN, :].set(we1)
    head = head.at[:, ROW_BE1, :].set(be1)
    head = head.at[:, ROW_WD1:ROW_WD1 + Z_DIM, :].set(wd1)
    head = head.at[:, ROW_BD1, :].set(bd1)

    # Shared slab: (SHARED_ROWS, 128), 40-row bands.
    shared = jnp.zeros((SHARED_ROWS, SHARED_COLS), jnp.float32)
    shared = shared.at[ROW_WE2:ROW_WE2 + HIDDEN, 0:HIDDEN].set(we2)
    shared = shared.at[ROW_BE2, 0:HIDDEN].set(be2[0])
    wmv = jnp.concatenate([wmu, wvar], axis=1)            # (H, 2*Z_DIM), fused
    bmv = jnp.concatenate([bmu, bvar], axis=1)            # (1, 2*Z_DIM)
    shared = shared.at[ROW_WMV:ROW_WMV + HIDDEN, 0:2 * Z_DIM].set(wmv)
    shared = shared.at[ROW_BMV, 0:2 * Z_DIM].set(bmv[0])
    shared = shared.at[ROW_WD2:ROW_WD2 + HIDDEN, 0:HIDDEN].set(wd2)
    shared = shared.at[ROW_BD2, 0:HIDDEN].set(bd2[0])
    # Output band: Wd3/bd3 pre-padded to 128 lanes at cols [0, D_OUT) ...
    shared = shared.at[ROW_WD3:ROW_WD3 + HIDDEN, COL_PRED:COL_PRED + D_OUT].set(wd3)
    shared = shared.at[ROW_BD3, COL_PRED:COL_PRED + D_OUT].set(bd3[0])
    # ... plus a 0/1 placement matrix dropping mu|var into cols [64, 68).
    for j in range(2 * Z_DIM):
        shared = shared.at[ROW_PLACE + j, COL_MUVAR + j].set(1.0)
    return head, shared


# ---------------------------------------------------------------------------
# Pure-JAX reference (for a correctness check of the kernel)
# ---------------------------------------------------------------------------
def vae_forward_ref(x, eps, head_id, params):
    (we1, be1, we2, be2, wmu, bmu, wvar, bvar,
     wd1, bd1, wd2, bd2, wd3, bd3) = params
    h = jnp.maximum(x @ we1[head_id] + be1[head_id], 0.0)
    h = jnp.maximum(h @ we2 + be2[0], 0.0)
    z_mu = h @ wmu + bmu[0]
    z_var = h @ wvar + bvar[0]
    z = z_mu + eps * jnp.exp(0.5 * z_var)
    d = jnp.maximum(z @ wd1[head_id] + bd1[head_id], 0.0)
    d = jnp.maximum(d @ wd2 + bd2[0], 0.0)
    pred = d @ wd3 + bd3[0]
    return pred, z_mu, z_var


if __name__ == "__main__":
    key = jax.random.PRNGKey(0)
    k_params, k_x, k_eps = jax.random.split(key, 3)

    params = init_params(k_params)
    head_slab, shared_slab = pack_params(params)

    # bf16 MXU operands (f32 accumulate) -> compare against the f32 reference
    # with relaxed tolerances.
    ATOL = RTOL = 1e-2

    # --------- fused multi-call path: 4 forward calls (4 heads) in one kernel ----
    num_blocks = 4
    total_b = num_blocks * TILE_B
    x = jax.random.normal(k_x, (total_b, D_IN), jnp.float32)
    # torch.randn_like(std) in training-mode reparam -> deterministic eps here.
    eps = jax.random.normal(k_eps, (total_b, Z_DIM), jnp.float32)
    head_ids = jnp.array([3, 0, 7, 5], jnp.int32)

    xe = pack_activations(x, eps)
    out = vae_forward_blocks(xe, head_ids, head_slab, shared_slab)
    jax.block_until_ready(out)
    pred, z_mu, z_var = unpack_outputs(out, total_b)
    assert pred.shape == (total_b, D_OUT) and z_mu.shape == (total_b, Z_DIM)

    for blk in range(num_blocks):
        sl = slice(blk * TILE_B, (blk + 1) * TILE_B)
        pred_r, mu_r, var_r = vae_forward_ref(x[sl], eps[sl], int(head_ids[blk]),
                                              params)
        assert jnp.allclose(pred[sl], pred_r, atol=ATOL, rtol=RTOL)
        assert jnp.allclose(z_mu[sl], mu_r, atol=ATOL, rtol=RTOL)
        assert jnp.allclose(z_var[sl], var_r, atol=ATOL, rtol=RTOL)

    # --------- single-call API (matches the PyTorch forward), ragged batch -------
    b_small = 5
    head_id = 2
    p2, m2, v2 = vae_forward(x[:b_small], eps[:b_small], head_id,
                             head_slab, shared_slab)
    jax.block_until_ready((p2, m2, v2))
    pr, mr, vr = vae_forward_ref(x[:b_small], eps[:b_small], head_id, params)
    assert p2.shape == (b_small, D_OUT)
    assert jnp.allclose(p2, pr, atol=ATOL, rtol=RTOL)
    assert jnp.allclose(m2, mr, atol=ATOL, rtol=RTOL)
    assert jnp.allclose(v2, vr, atol=ATOL, rtol=RTOL)

    print("KERNEL_OK")
</pallas_src>

<mosaic_0001>
module attributes {stable_mosaic.version = 11 : i64} {
  func.func @vae_fwd_kernel(%arg0: i32, %arg1: memref<4xi32, #tpu.memory_space<smem>>, %arg2: memref<8x16xf32, #tpu.memory_space<vmem>>, %arg3: memref<1x16x32xf32, #tpu.memory_space<vmem>>, %arg4: memref<160x128xf32, #tpu.memory_space<vmem>>, %arg5: memref<8x128xf32, #tpu.memory_space<vmem>>) attributes {dimension_semantics = [#tpu.dimension_semantics<parallel>], iteration_bounds = array<i64: 4>, scalar_prefetch = 1 : i64, scratch_operands = 0 : i64, tpu.core_type = #tpu.core_type<tc>, window_params = [{transform_indices = @transform_0, window_bounds = array<i64: 8, 16>}, {transform_indices = @transform_1, window_bounds = array<i64: 1, 16, 32>}, {pipeline_mode = #tpu.pipeline_mode<synchronous>, transform_indices = @transform_2, window_bounds = array<i64: 160, 128>}, {transform_indices = @transform_3, window_bounds = array<i64: 8, 128>}]} {
    %c0 = arith.constant 0 : index
    %c0_0 = arith.constant 0 : index
    %0 = vector.load %arg2[%c0, %c0_0] : memref<8x16xf32, #tpu.memory_space<vmem>>, vector<8x16xf32>
    %1 = vector.extract_strided_slice %0 {offsets = [0, 0], sizes = [8, 7], strides = [1, 1]} : vector<8x16xf32> to vector<8x7xf32>
    %2 = vector.extract_strided_slice %0 {offsets = [0, 8], sizes = [8, 2], strides = [1, 1]} : vector<8x16xf32> to vector<8x2xf32>
    %c0_1 = arith.constant 0 : index
    %c0_2 = arith.constant 0 : index
    %c0_3 = arith.constant 0 : index
    %3 = vector.load %arg3[%c0_1, %c0_2, %c0_3] : memref<1x16x32xf32, #tpu.memory_space<vmem>>, vector<1x16x32xf32>
    %4 = vector.shape_cast %3 : vector<1x16x32xf32> to vector<16x32xf32>
    %5 = vector.extract_strided_slice %4 {offsets = [0, 0], sizes = [7, 32], strides = [1, 1]} : vector<16x32xf32> to vector<7x32xf32>
    %6 = arith.truncf %5 : vector<7x32xf32> to vector<7x32xbf16>
    %7 = vector.extract_strided_slice %4 {offsets = [7, 0], sizes = [1, 32], strides = [1, 1]} : vector<16x32xf32> to vector<1x32xf32>
    %8 = arith.truncf %1 : vector<8x7xf32> to vector<8x7xbf16>
    %cst = arith.constant dense<0.000000e+00> : vector<8x32xf32>
    %9 = tpu.matmul %8, %6, %cst {dimension_numbers = #tpu.dot_dimension_numbers<[1], [0], [0], [1], [0, 0, 1, 1], [], []>} : vector<8x7xbf16>, vector<7x32xbf16>, vector<8x32xf32> -> vector<8x32xf32>
    %10 = vector.broadcast %7 : vector<1x32xf32> to vector<8x32xf32>
    %11 = arith.addf %9, %10 : vector<8x32xf32>
    %cst_4 = arith.constant 0.000000e+00 : f32
    %12 = vector.broadcast %cst_4 : f32 to vector<8x32xf32>
    %13 = arith.maximumf %11, %12 : vector<8x32xf32>
    %c0_5 = arith.constant 0 : index
    %c0_6 = arith.constant 0 : index
    %14 = vector.load %arg4[%c0_5, %c0_6] : memref<160x128xf32, #tpu.memory_space<vmem>>, vector<32x32xf32>
    %15 = arith.truncf %14 : vector<32x32xf32> to vector<32x32xbf16>
    %c32 = arith.constant 32 : index
    %c0_7 = arith.constant 0 : index
    %16 = vector.load %arg4[%c32, %c0_7] : memref<160x128xf32, #tpu.memory_space<vmem>>, vector<1x32xf32>
    %17 = arith.truncf %13 : vector<8x32xf32> to vector<8x32xbf16>
    %cst_8 = arith.constant dense<0.000000e+00> : vector<8x32xf32>
    %18 = tpu.matmul %17, %15, %cst_8 {dimension_numbers = #tpu.dot_dimension_numbers<[1], [0], [0], [1], [0, 0, 1, 1], [], []>} : vector<8x32xbf16>, vector<32x32xbf16>, vector<8x32xf32> -> vector<8x32xf32>
    %19 = vector.broadcast %16 : vector<1x32xf32> to vector<8x32xf32>
    %20 = arith.addf %18, %19 : vector<8x32xf32>
    %cst_9 = arith.constant 0.000000e+00 : f32
    %21 = vector.broadcast %cst_9 : f32 to vector<8x32xf32>
    %22 = arith.maximumf %20, %21 : vector<8x32xf32>
    %c40 = arith.constant 40 : index
    %c0_10 = arith.constant 0 : index
    %23 = vector.load %arg4[%c40, %c0_10] : memref<160x128xf32, #tpu.memory_space<vmem>>, vector<32x4xf32>
    %24 = arith.truncf %23 : vector<32x4xf32> to vector<32x4xbf16>
    %c72 = arith.constant 72 : index
    %c0_11 = arith.constant 0 : index
    %25 = vector.load %arg4[%c72, %c0_11] : memref<160x128xf32, #tpu.memory_space<vmem>>, vector<1x4xf32>
    %26 = arith.truncf %22 : vector<8x32xf32> to vector<8x32xbf16>
    %cst_12 = arith.constant dense<0.000000e+00> : vector<8x4xf32>
    %27 = tpu.matmul %26, %24, %cst_12 {dimension_numbers = #tpu.dot_dimension_numbers<[1], [0], [0], [1], [0, 0, 1, 1], [], []>} : vector<8x32xbf16>, vector<32x4xbf16>, vector<8x4xf32> -> vector<8x4xf32>
    %28 = vector.broadcast %25 : vector<1x4xf32> to vector<8x4xf32>
    %29 = arith.addf %27, %28 : vector<8x4xf32>
    %30 = vector.extract_strided_slice %29 {offsets = [0, 0], sizes = [8, 2], strides = [1, 1]} : vector<8x4xf32> to vector<8x2xf32>
    %31 = vector.extract_strided_slice %29 {offsets = [0, 2], sizes = [8, 2], strides = [1, 1]} : vector<8x4xf32> to vector<8x2xf32>
    %cst_13 = arith.constant 5.000000e-01 : f32
    %32 = vector.broadcast %cst_13 : f32 to vector<8x2xf32>
    %33 = arith.mulf %32, %31 : vector<8x2xf32>
    %34 = math.exp %33 : vector<8x2xf32>
    %35 = arith.mulf %2, %34 : vector<8x2xf32>
    %36 = arith.addf %30, %35 : vector<8x2xf32>
    %37 = vector.extract_strided_slice %4 {offsets = [10, 0], sizes = [1, 32], strides = [1, 1]} : vector<16x32xf32> to vector<1x32xf32>
    %38 = vector.extract_strided_slice %36 {offsets = [0, 0], sizes = [8, 1], strides = [1, 1]} : vector<8x2xf32> to vector<8x1xf32>
    %39 = vector.extract_strided_slice %4 {offsets = [8, 0], sizes = [1, 32], strides = [1, 1]} : vector<16x32xf32> to vector<1x32xf32>
    %40 = vector.broadcast %38 : vector<8x1xf32> to vector<8x32xf32>
    %41 = vector.broadcast %39 : vector<1x32xf32> to vector<8x32xf32>
    %42 = arith.mulf %40, %41 : vector<8x32xf32>
    %43 = vector.broadcast %37 : vector<1x32xf32> to vector<8x32xf32>
    %44 = arith.addf %43, %42 : vector<8x32xf32>
    %45 = vector.extract_strided_slice %36 {offsets = [0, 1], sizes = [8, 1], strides = [1, 1]} : vector<8x2xf32> to vector<8x1xf32>
    %46 = vector.extract_strided_slice %4 {offsets = [9, 0], sizes = [1, 32], strides = [1, 1]} : vector<16x32xf32> to vector<1x32xf32>
    %47 = vector.broadcast %45 : vector<8x1xf32> to vector<8x32xf32>
    %48 = vector.broadcast %46 : vector<1x32xf32> to vector<8x32xf32>
    %49 = arith.mulf %47, %48 : vector<8x32xf32>
    %50 = arith.addf %44, %49 : vector<8x32xf32>
    %cst_14 = arith.constant 0.000000e+00 : f32
    %51 = vector.broadcast %cst_14 : f32 to vector<8x32xf32>
    %52 = arith.maximumf %50, %51 : vector<8x32xf32>
    %c80 = arith.constant 80 : index
    %c0_15 = arith.constant 0 : index
    %53 = vector.load %arg4[%c80, %c0_15] : memref<160x128xf32, #tpu.memory_space<vmem>>, vector<32x32xf32>
    %54 = arith.truncf %53 : vector<32x32xf32> to vector<32x32xbf16>
    %c112 = arith.constant 112 : index
    %c0_16 = arith.constant 0 : index
    %55 = vector.load %arg4[%c112, %c0_16] : memref<160x128xf32, #tpu.memory_space<vmem>>, vector<1x32xf32>
    %56 = arith.truncf %52 : vector<8x32xf32> to vector<8x32xbf16>
    %cst_17 = arith.constant dense<0.000000e+00> : vector<8x32xf32>
    %57 = tpu.matmul %56, %54, %cst_17 {dimension_numbers = #tpu.dot_dimension_numbers<[1], [0], [0], [1], [0, 0, 1, 1], [], []>} : vector<8x32xbf16>, vector<32x32xbf16>, vector<8x32xf32> -> vector<8x32xf32>
    %58 = vector.broadcast %55 : vector<1x32xf32> to vector<8x32xf32>
    %59 = arith.addf %57, %58 : vector<8x32xf32>
    %cst_18 = arith.constant 0.000000e+00 : f32
    %60 = vector.broadcast %cst_18 : f32 to vector<8x32xf32>
    %61 = arith.maximumf %59, %60 : vector<8x32xf32>
    %c120 = arith.constant 120 : index
    %c0_19 = arith.constant 0 : index
    %62 = vector.load %arg4[%c120, %c0_19] : memref<160x128xf32, #tpu.memory_space<vmem>>, vector<32x128xf32>
    %63 = arith.truncf %62 : vector<32x128xf32> to vector<32x128xbf16>
    %c152 = arith.constant 152 : index
    %c0_20 = arith.constant 0 : index
    %64 = vector.load %arg4[%c152, %c0_20] : memref<160x128xf32, #tpu.memory_space<vmem>>, vector<1x128xf32>
    %c153 = arith.constant 153 : index
    %c0_21 = arith.constant 0 : index
    %65 = vector.load %arg4[%c153, %c0_21] : memref<160x128xf32, #tpu.memory_space<vmem>>, vector<4x128xf32>
    %66 = arith.truncf %61 : vector<8x32xf32> to vector<8x32xbf16>
    %cst_22 = arith.constant dense<0.000000e+00> : vector<8x128xf32>
    %67 = tpu.matmul %66, %63, %cst_22 {dimension_numbers = #tpu.dot_dimension_numbers<[1], [0], [0], [1], [0, 0, 1, 1], [], []>} : vector<8x32xbf16>, vector<32x128xbf16>, vector<8x128xf32> -> vector<8x128xf32>
    %68 = vector.broadcast %64 : vector<1x128xf32> to vector<8x128xf32>
    %69 = arith.addf %67, %68 : vector<8x128xf32>
    %cst_23 = arith.constant dense<0.000000e+00> : vector<8x128xf32>
    %70 = tpu.matmul %29, %65, %cst_23 {dimension_numbers = #tpu.dot_dimension_numbers<[1], [0], [0], [1], [0, 0, 1, 1], [], []>} : vector<8x4xf32>, vector<4x128xf32>, vector<8x128xf32> -> vector<8x128xf32>
    %71 = arith.addf %69, %70 : vector<8x128xf32>
    %c0_24 = arith.constant 0 : index
    %c0_25 = arith.constant 0 : index
    %72 = vector.load %arg5[%c0_24, %c0_25] : memref<8x128xf32, #tpu.memory_space<vmem>>, vector<8x128xf32>
    tpu.vector_store %arg5[%c0_24, %c0_25], %71 {strides = array<i32>} : memref<8x128xf32, #tpu.memory_space<vmem>>, vector<8x128xf32>,
    return
  }
  func.func @transform_0(%arg0: i32, %arg1: memref<4xi32, #tpu.memory_space<smem>>) -> (i32, i32) {
    %c0_i32 = arith.constant 0 : i32
    %c0_i32_0 = arith.constant 0 : i32
    return %arg0, %c0_i32 : i32, i32
  }
  func.func @transform_1(%arg0: i32, %arg1: memref<4xi32, #tpu.memory_space<smem>>) -> (i32, i32, i32) {
    %0 = arith.index_cast %arg0 : i32 to index
    %1 = memref.load %arg1[%0] : memref<4xi32, #tpu.memory_space<smem>>
    %c0_i32 = arith.constant 0 : i32
    %c0_i32_0 = arith.constant 0 : i32
    %c0_i32_1 = arith.constant 0 : i32
    return %1, %c0_i32, %c0_i32_0 : i32, i32, i32
  }
  func.func @transform_2(%arg0: i32, %arg1: memref<4xi32, #tpu.memory_space<smem>>) -> (i32, i32) {
    %c0_i32 = arith.constant 0 : i32
    %c0_i32_0 = arith.constant 0 : i32
    %c0_i32_1 = arith.constant 0 : i32
    return %c0_i32, %c0_i32_0 : i32, i32
  }
  func.func @transform_3(%arg0: i32, %arg1: memref<4xi32, #tpu.memory_space<smem>>) -> (i32, i32) {
    %c0_i32 = arith.constant 0 : i32
    %c0_i32_0 = arith.constant 0 : i32
    return %arg0, %c0_i32 : i32, i32
  }
}

</mosaic_0001>

<llo_original>
// kernel: vae_forward_blocks.1
$region0: #{vae_forward_blocks.1}
  #allocation0 [shape = 'u32[]', space=smem, size = 0x4, offset = 0x4, fixed_abs, tag = 'smem constant byte address 0x4 - core index']
  #allocation1 [shape = 'u32[144,128]{1,0:T(1,128)}', space=vmem, size = 0x12000, scoped, tag = 'internal scratch']
  #allocation2 [shape = 's32[1]{0}', space=sflag, size = 0x4, scoped, tag = 'scoped memory for vae_forward_blocks.1']
  #allocation3 [shape = 'u8[512]{0}', space=smem, size = 0x200, scoped, tag = 'prefetched SMEM operand 0']
  %s0 = inlined_call_operand.vmem [shape: s32[4], index: 0, kind: input, shape index: {}]
  %s1 = inlined_call_operand.vmem [shape: f32[32,16], index: 1, kind: input, shape index: {}]
  %s2 = inlined_call_operand.hbm [shape: f32[8,16,32], index: 2, kind: input, shape index: {}]
  %s3 = inlined_call_operand.hbm [shape: f32[160,128], index: 3, kind: input, shape index: {}]
  %s4 = inlined_call_operand.hbm [shape: f32[32,128], index: 4, kind: output, shape index: {}]
  %s5 = sld [smem:[#allocation0]]
  $region53: #{vae_forward_blocks.1} parent=0
    _
  %s7 = ssub.s32 1, %s5
  %s8 = scalar_select 0, %s7, %s5
  %s9 = sshll.u32 %s0, 4
  %s10 = int_to_ptr.vmem [resolvable:$true] %s9
  %12 = dma.vmem_to_smem %s10, 16, [#allocation3], [#allocation2]
  %13 = dma.done [#allocation2], 16
  %14 = sfence
  $region1: #{vae_forward_blocks.1} parent=0
    #allocation4 [shape = 'u8[16384]{0}', space=vmem, size = 0x4000, scoped, tag = 'input window, operand 2']
    #allocation5 [shape = 's32[2]{0}', space=sflag, size = 0x8, scoped, tag = 'scoped memory for vae_forward_blocks.1']
    #allocation6 [shape = 's32[2]{0}', space=sflag, size = 0x8, scoped, tag = 'scoped memory for vae_forward_blocks.1']
    #allocation7 [shape = 'u8[81920]{0}', space=vmem, size = 0x14000, scoped, tag = 'input window, operand 3, single buffered']
    #allocation8 [shape = 's32[1]{0}', space=sflag, size = 0x4, scoped, tag = 'scoped memory for vae_forward_blocks.1']
    #allocation9 [shape = 'u8[8192]{0}', space=vmem, size = 0x2000, scoped, tag = 'output window, operand 0']
    %15 = vsyncpa [#allocation5], 0
    %s16 = scalar_lea.sflag [#allocation5], 1
    %17 = vsyncpa %s16, 0
    %18 = vsyncpa [#allocation8], 0
    %19 = vsyncpa [#allocation6], 0
    %s20 = scalar_lea.sflag [#allocation6], 1
    %21 = vsyncpa %s20, 0
    loop: start=0, step=1, limit=6
    $region2: #{vae_forward_blocks.1} parent=1 // loop_pre_header
      _
    $region3: #{vae_forward_blocks.1} parent=1 // loop_header
      %s23 = sphi 0, %s27
      %p24 = scmp.ge.s32.totalorder %s23, 6
      %s33 = sphi 0, %s35
      %s36 = sphi 0, %s33
      %s37 = sphi 0, %s36
      %s53 = sphi 0, %s37
      %s61 = sphi 0, %s63
      %s64 = sphi 0, %s61
      %s65 = sphi 0, %s64
      %s81 = sphi 0, %s65
      %s85 = sphi 0, %s85
      %s87 = sphi 0, %s85
      %s88 = sphi 0, %s87
      %s102 = sphi 0, %s88
      %s108 = sphi 0, %s110
      %s111 = sphi 0, %s108
      %s112 = sphi 0, %s111
      %s128 = sphi 0, %s112
    $region4: #{vae_forward_blocks.1} parent=1 // loop_header_branch
      %26 = sbr.rel (%p24) target = $region8
    $region5: #{vae_forward_blocks.1} parent=1 // loop_body
      %s28 = ssub.s32 %s23, 1
      %s29 = ssub.s32 %s23, 2
      %s30 = sadd.s32 %s23, 1
      %s31 = ssub.s32 %s23, %s30
      %p32 = scmp.eq.s32.totalorder %s31, 0
      %s34 = sadd.s32 %s33, 1
      %s35 = scalar_select %p32, %s33, %s34
      %p38 = pneg %p32
      %p39 = scmp.eq.s32.totalorder %s23, 3
      %p40 = por %p38, %p39
      %p41 = scmp.ne.s32.totalorder %s33, %s36
      %p42 = scmp.eq.s32.totalorder %s23, 0
      %p43 = por %p41, %p42
      %p44 = scmp.ne.s32.totalorder %s33, %s36
      %p45 = scmp.eq.s32.totalorder %s28, 3
      %p46 = por %p44, %p45
      %p47 = scmp.ne.s32.totalorder %s36, %s37
      %p48 = scmp.eq.s32.totalorder %s28, 0
      %p49 = por %p47, %p48
      %p50 = scmp.ne.s32.totalorder %s36, %s37
      %p51 = scmp.eq.s32.totalorder %s29, 3
      %p52 = por %p50, %p51
      %p54 = scmp.ne.s32.totalorder %s37, %s53
      %p55 = scmp.eq.s32.totalorder %s29, 0
      %p56 = por %p54, %p55
      %s57 = sld [smem:[#allocation3 + %s23]]
      %s58 = sld [smem:[#allocation3 + %s30]]
      %s59 = ssub.s32 %s57, %s58
      %p60 = scmp.eq.s32.totalorder %s59, 0
      %s62 = sadd.s32 %s61, 1
      %s63 = scalar_select %p60, %s61, %s62
      %p66 = pneg %p60
      %p67 = scmp.eq.s32.totalorder %s23, 3
      %p68 = por %p66, %p67
      %p69 = scmp.ne.s32.totalorder %s61, %s64
      %p70 = scmp.eq.s32.totalorder %s23, 0
      %p71 = por %p69, %p70
      %p72 = scmp.ne.s32.totalorder %s61, %s64
      %p73 = scmp.eq.s32.totalorder %s28, 3
      %p74 = por %p72, %p73
      %p75 = scmp.ne.s32.totalorder %s64, %s65
      %p76 = scmp.eq.s32.totalorder %s28, 0
      %p77 = por %p75, %p76
      %p78 = scmp.ne.s32.totalorder %s64, %s65
      %p79 = scmp.eq.s32.totalorder %s29, 3
      %p80 = por %p78, %p79
      %p82 = scmp.ne.s32.totalorder %s65, %s81
      %p83 = scmp.eq.s32.totalorder %s29, 0
      %p84 = por %p82, %p83
      %s86 = sadd.s32 %s85, 1
      %p89 = scmp.eq.s32.totalorder %s23, 3
      %p90 = scmp.ne.s32.totalorder %s85, %s87
      %p91 = scmp.eq.s32.totalorder %s23, 0
      %p92 = por %p90, %p91
      %p93 = scmp.ne.s32.totalorder %s85, %s87
      %p94 = scmp.eq.s32.totalorder %s28, 3
      %p95 = por %p93, %p94
      %p96 = scmp.ne.s32.totalorder %s87, %s88
      %p97 = scmp.eq.s32.totalorder %s28, 0
      %p98 = por %p96, %p97
      %p99 = scmp.ne.s32.totalorder %s87, %s88
      %p100 = scmp.eq.s32.totalorder %s29, 3
      %p101 = por %p99, %p100
      %p103 = scmp.ne.s32.totalorder %s88, %s102
      %p104 = scmp.eq.s32.totalorder %s29, 0
      %p105 = por %p103, %p104
      %s106 = ssub.s32 %s23, %s30
      %p107 = scmp.eq.s32.totalorder %s106, 0
      %s109 = sadd.s32 %s108, 1
      %s110 = scalar_select %p107, %s108, %s109
      %p113 = pneg %p107
      %p114 = scmp.eq.s32.totalorder %s23, 3
      %p115 = por %p113, %p114
      %p116 = scmp.ne.s32.totalorder %s108, %s111
      %p117 = scmp.eq.s32.totalorder %s23, 0
      %p118 = por %p116, %p117
      %p119 = scmp.ne.s32.totalorder %s108, %s111
      %p120 = scmp.eq.s32.totalorder %s28, 3
      %p121 = por %p119, %p120
      %p122 = scmp.ne.s32.totalorder %s111, %s112
      %p123 = scmp.eq.s32.totalorder %s28, 0
      %p124 = por %p122, %p123
      %p125 = scmp.ne.s32.totalorder %s111, %s112
      %p126 = scmp.eq.s32.totalorder %s29, 3
      %p127 = por %p125, %p126
      %p129 = scmp.ne.s32.totalorder %s112, %s128
      %p130 = scmp.eq.s32.totalorder %s29, 0
      %p131 = por %p129, %p130
      %p132 = scmp.le.s32.totalorder 1, %s23
      %p133 = scmp.lt.s32.totalorder %s23, 5
      %p134 = pnand %p132, %p133
      %p135 = pneg %p134
      // Predicated region
      $region9: #{vae_forward_blocks.1} parent=5 // pred_check
        _
      $region10: #{vae_forward_blocks.1} parent=5 // pred_check_branch
        %137 = sbr.rel (%p134) target = $region12
      $region11: #{vae_forward_blocks.1} parent=5 // pred_region
        %s138 = ssub.s32 %s23, 1
        // Predicated region
        $region13: #{vae_forward_blocks.1} parent=11 // pred_check
          %p139 = pneg %p98
        $region14: #{vae_forward_blocks.1} parent=11 // pred_check_branch
          %141 = sbr.rel (%p139) target = $region16
        $region15: #{vae_forward_blocks.1} parent=11 // pred_region
          %s143 = ssub.s32 2560, 2560
          %144 = vsyncadd [#allocation8], %s143
          %s145 = sshll.u32 [#allocation7], 4
          %s146 = int_to_ptr.vmem [resolvable:$true] %s145
          %151 = dma.hbm_to_vmem [thread:$0]  %s3, 2560, %s146, [#allocation8], 128, 128, 8
        $region16: #{vae_forward_blocks.1} parent=11 // pred_fallthru
          _
      $region12: #{vae_forward_blocks.1} parent=5 // pred_fallthru
        _
      %p152 = scmp.lt.s32.totalorder %s23, 4
      // Predicated region
      $region17: #{vae_forward_blocks.1} parent=5 // pred_check
        %p153 = pneg %p152
      $region18: #{vae_forward_blocks.1} parent=5 // pred_check_branch
        %155 = sbr.rel (%p153) target = $region20
      $region19: #{vae_forward_blocks.1} parent=5 // pred_region
        // Predicated region
        $region21: #{vae_forward_blocks.1} parent=19 // pred_check
          %p156 = pneg %p43
        $region22: #{vae_forward_blocks.1} parent=19 // pred_check_branch
          %158 = sbr.rel (%p156) target = $region24
        $region23: #{vae_forward_blocks.1} parent=19 // pred_region
          %p159 = scmp.lt.s32.totalorder %s23, 3
          %s160 = scalar_select %p159, %s23, 3
          %s161 = smul.addr %s160, 8
          %s162 = scalar_lea.vmem %s1, %s161
        $region24: #{vae_forward_blocks.1} parent=19 // pred_fallthru
          _
        // Predicated region
        $region25: #{vae_forward_blocks.1} parent=19 // pred_check
          %p163 = pneg %p71
        $region26: #{vae_forward_blocks.1} parent=19 // pred_check_branch
          %165 = sbr.rel (%p163) target = $region28
        $region27: #{vae_forward_blocks.1} parent=19 // pred_region
          %s166 = sand.u32 %s61, 1
          %s167 = scalar_lea.sflag [#allocation5], %s166
          %s168 = sand.u32 %s61, 1
          %s169 = smul.addr %s168, 16
          %s170 = scalar_lea.vmem [#allocation4], %s169
          %s171 = sld [smem:[#allocation3 + %s23]]
          %s173 = ssub.s32 256, 256
          %174 = vsyncadd %s167, %s173
          %s175 = smul.addr %s171, 2
          %s176 = smul.addr %s175, 128
          %s177 = scalar_lea.hbm %s2, %s176
          %s178 = sshll.u32 %s170, 4
          %s179 = int_to_ptr.vmem [resolvable:$true] %s178
          %184 = dma.hbm_to_vmem [thread:$0]  %s177, 256, %s179, %s167, 128, 128, 8
        $region28: #{vae_forward_blocks.1} parent=19 // pred_fallthru
          _
      $region20: #{vae_forward_blocks.1} parent=5 // pred_fallthru
        _
      %p185 = scmp.le.s32.totalorder 1, %s23
      %p186 = scmp.lt.s32.totalorder %s23, 5
      %p187 = pnand %p185, %p186
      %p188 = pneg %p187
      // Predicated region
      $region29: #{vae_forward_blocks.1} parent=5 // pred_check
        _
      $region30: #{vae_forward_blocks.1} parent=5 // pred_check_branch
        %190 = sbr.rel (%p187) target = $region32
      $region31: #{vae_forward_blocks.1} parent=5 // pred_region
        %s191 = ssub.s32 %s23, 1
        %s192 = sand.u32 %s64, 1
        %s193 = scalar_lea.sflag [#allocation5], %s192
        %s194 = sand.u32 %s64, 1
        %s195 = smul.addr %s194, 16
        %s196 = scalar_lea.vmem [#allocation4], %s195
        // Predicated region
        $region33: #{vae_forward_blocks.1} parent=31 // pred_check
          %p197 = pneg %p77
        $region34: #{vae_forward_blocks.1} parent=31 // pred_check_branch
          %199 = sbr.rel (%p197) target = $region36
        $region35: #{vae_forward_blocks.1} parent=31 // pred_region
          %200 = dma.done %s193, 256
        $region36: #{vae_forward_blocks.1} parent=31 // pred_fallthru
          _
        // Predicated region
        $region37: #{vae_forward_blocks.1} parent=31 // pred_check
          %p201 = pneg %p98
        $region38: #{vae_forward_blocks.1} parent=31 // pred_check_branch
          %203 = sbr.rel (%p201) target = $region40
        $region39: #{vae_forward_blocks.1} parent=31 // pred_region
          %204 = dma.done [#allocation8], 2560
        $region40: #{vae_forward_blocks.1} parent=31 // pred_fallthru
          _
        %p205 = scmp.lt.s32.totalorder %s28, 3
        %s206 = scalar_select %p205, %s28, 3
        %s207 = smul.addr %s206, 8
        %s208 = scalar_lea.vmem %s1, %s207
        %p209 = pneg %p49
        %p210 = pneg %p46
        %s211 = sand.u32 %s64, 1
        %s212 = scalar_lea.sflag [#allocation5], %s211
        %s213 = sand.u32 %s64, 1
        %s214 = smul.addr %s213, 16
        %s215 = scalar_lea.vmem [#allocation4], %s214
        %p216 = pneg %p77
        %p217 = pneg %p74
        %p218 = pneg %p98
        %p219 = pneg %p95
        %p220 = pneg %p124
        %p221 = pneg %p121
        %s222 = sand.u32 %s111, 1
        %s223 = scalar_lea.sflag [#allocation6], %s222
        %s224 = sand.u32 %s111, 1
        %s225 = smul.addr %s224, 8
        %s226 = scalar_lea.vmem [#allocation9], %s225
        %p227 = scmp.lt.s32.totalorder %s28, 3
        %s228 = scalar_select %p227, %s28, 3
        %s229 = smul.addr %s228, 8
        %s230 = scalar_lea.vmem %s1, %s229
        %s231 = sld [smem:[#allocation3 + %s28]]
        %v233 = vld [vmem:[%s230] sm:$0xff]
        %v234 = vld [vmem:[%s196] sm:$0xff]
        %v235 = vld [vmem:[%s196 + $0x8] sm:$0xff]
        %v236 = vpack.c.bf16 %v234, %v234
        %v237 = vpack.c.bf16 %v233, %v233
        %v238 = vlaneseq
        %v239 = vshrl.u32 %v238, 7
        %v240 = vsub.s32 7, %v239
        %v241 = vrot.slane %v234, %v240
        %vm242 = vcmask 56320
        %v244 = vsel %vm242, %v237, 0
        %vm246 = vcmask 1042432
        %vm247 = vcmask 1043456
        %v248 = vsel %vm246, 4294967295, 65535
        %v249 = vsel %vm247, %v248, 0
        %v251 = vand.u32 %v236, %v249
        %253 = vmatprep.subr.bf16.mxu0 0
        %254 = vmatpush1.bf16.msra.mxu0 %v251
        %255 = vmatprep.subr.bf16.mxu0 0
        %256 = vmatpush1.bf16.msra.mxu0 0
        %257 = vmatprep.subr.bf16.mxu0 0
        %258 = vmatpush1.bf16.msra.mxu0 0
        %259 = vmatprep.subr.bf16.mxu0 0
        %260 = vmatpush1.bf16.msra.mxu0 0
        %261 = vmatprep.subr.bf16.mxu0 0
        %262 = vmatpush1.bf16.msra.mxu0 0
        %263 = vmatprep.subr.bf16.mxu0 0
        %264 = vmatpush1.bf16.msra.mxu0 0
        %265 = vmatprep.subr.bf16.mxu0 0
        %266 = vmatpush1.bf16.msra.mxu0 0
        %267 = vmatprep.subr.bf16.mxu0 0
        %268 = vmatpush1.bf16.msra.mxu0 0
        %269 = vmatprep.subr.bf16.mxu0 0
        %270 = vmatpush1.bf16.msra.mxu0 0
        %271 = vmatprep.subr.bf16.mxu0 0
        %272 = vmatpush1.bf16.msra.mxu0 0
        %273 = vmatprep.subr.bf16.mxu0 0
        %274 = vmatpush1.bf16.msra.mxu0 0
        %275 = vmatprep.subr.bf16.mxu0 0
        %276 = vmatpush1.bf16.msra.mxu0 0
        %277 = vmatprep.subr.bf16.mxu0 0
        %278 = vmatpush1.bf16.msra.mxu0 0
        %279 = vmatprep.subr.bf16.mxu0 0
        %280 = vmatpush1.bf16.msra.mxu0 0
        %281 = vmatprep.subr.bf16.mxu0 0
        %282 = vmatpush1.bf16.msra.mxu0 0
        %283 = vmatprep.subr.bf16.mxu0 0
        %284 = vmatpush1.bf16.msra.mxu0 0
        %285 = vmatprep.mubr.bf16.mxu0 0
        %286 = vmatmul.mubr.bf16.gmra.mrb[0].mxu0 %v244
        %v287 = vpop.f32.mrb[0].mxu0
        %v288 = vadd.f32 %v241, %v287
        %v289 = vpop.f32.mrb[0].mxu0
        %v290 = vpop.f32.mrb[0].mxu0
        %v291 = vpop.f32.mrb[0].mxu0
        %292 = vdwg.mxu0
        %v293 = vmax.f32 %v288, 0.0
        %v294 = vld [vmem:[#allocation7] sm:$0xff]
        %v295 = vld [vmem:[#allocation7 + $0x8] sm:$0xff]
        %v296 = vld [vmem:[#allocation7 + $0x10] sm:$0xff]
        %v297 = vld [vmem:[#allocation7 + $0x18] sm:$0xff]
        %v298 = vpack.c.bf16 %v295, %v294
        %v299 = vpack.c.bf16 %v297, %v296
        %v300 = vld [vmem:[#allocation7 + $0x20] sm:$0x1]
        %v301 = vpack.c.bf16 %v293, %v293
        %v302 = vlaneseq
        %v303 = vshrl.u32 %v302, 7
        %v304 = vsub.s32 0, %v303
        %v305 = vrot.slane %v300, %v304
        %vm306 = vcmask 261120
        %v308 = vsel %vm306, %v301, 0
        %310 = vmatprep.subr.bf16.mxu0 0
        %311 = vmatpush1.bf16.msra.mxu0 %v298
        %312 = vmatprep.subr.bf16.mxu0 0
        %313 = vmatpush1.bf16.msra.mxu0 %v299
        %314 = vmatprep.subr.bf16.mxu0 0
        %315 = vmatpush1.bf16.msra.mxu0 0
        %316 = vmatprep.subr.bf16.mxu0 0
        %317 = vmatpush1.bf16.msra.mxu0 0
        %318 = vmatprep.subr.bf16.mxu0 0
        %319 = vmatpush1.bf16.msra.mxu0 0
        %320 = vmatprep.subr.bf16.mxu0 0
        %321 = vmatpush1.bf16.msra.mxu0 0
        %322 = vmatprep.subr.bf16.mxu0 0
        %323 = vmatpush1.bf16.msra.mxu0 0
        %324 = vmatprep.subr.bf16.mxu0 0
        %325 = vmatpush1.bf16.msra.mxu0 0
        %326 = vmatprep.subr.bf16.mxu0 0
        %327 = vmatpush1.bf16.msra.mxu0 0
        %328 = vmatprep.subr.bf16.mxu0 0
        %329 = vmatpush1.bf16.msra.mxu0 0
        %330 = vmatprep.subr.bf16.mxu0 0
        %331 = vmatpush1.bf16.msra.mxu0 0
        %332 = vmatprep.subr.bf16.mxu0 0
        %333 = vmatpush1.bf16.msra.mxu0 0
        %334 = vmatprep.subr.bf16.mxu0 0
        %335 = vmatpush1.bf16.msra.mxu0 0
        %336 = vmatprep.subr.bf16.mxu0 0
        %337 = vmatpush1.bf16.msra.mxu0 0
        %338 = vmatprep.subr.bf16.mxu0 0
        %339 = vmatpush1.bf16.msra.mxu0 0
        %340 = vmatprep.subr.bf16.mxu0 0
        %341 = vmatpush1.bf16.msra.mxu0 0
        %342 = vmatprep.mubr.bf16.mxu0 0
        %343 = vmatmul.mubr.bf16.gmra.mrb[0].mxu0 %v308
        %v344 = vpop.f32.mrb[0].mxu0
        %v345 = vadd.f32 %v305, %v344
        %v346 = vpop.f32.mrb[0].mxu0
        %v347 = vpop.f32.mrb[0].mxu0
        %v348 = vpop.f32.mrb[0].mxu0
        %349 = vdwg.mxu0
        %v350 = vmax.f32 %v345, 0.0
        %v351 = vld [vmem:[#allocation7 + $0x28] sm:$0xff]
        %v352 = vld [vmem:[#allocation7 + $0x30] sm:$0xff]
        %v353 = vld [vmem:[#allocation7 + $0x38] sm:$0xff]
        %v354 = vld [vmem:[#allocation7 + $0x40] sm:$0xff]
        %v355 = vpack.c.bf16 %v352, %v351
        %v356 = vpack.c.bf16 %v354, %v353
        %v357 = vld [vmem:[#allocation7 + $0x48] sm:$0x1]
        %v358 = vpack.c.bf16 %v350, %v350
        %v359 = vlaneseq
        %v360 = vshrl.u32 %v359, 7
        %v361 = vsub.s32 0, %v360
        %v362 = vrot.slane %v357, %v361
        %v364 = vsel %vm306, %v358, 0
        %366 = vmatprep.subr.bf16.mxu0 0
        %367 = vmatpush1.bf16.msra.mxu0 %v355
        %368 = vmatprep.subr.bf16.mxu0 0
        %369 = vmatpush1.bf16.msra.mxu0 %v356
        %370 = vmatprep.subr.bf16.mxu0 0
        %371 = vmatpush1.bf16.msra.mxu0 0
        %372 = vmatprep.subr.bf16.mxu0 0
        %373 = vmatpush1.bf16.msra.mxu0 0
        %374 = vmatprep.subr.bf16.mxu0 0
        %375 = vmatpush1.bf16.msra.mxu0 0
        %376 = vmatprep.subr.bf16.mxu0 0
        %377 = vmatpush1.bf16.msra.mxu0 0
        %378 = vmatprep.subr.bf16.mxu0 0
        %379 = vmatpush1.bf16.msra.mxu0 0
        %380 = vmatprep.subr.bf16.mxu0 0
        %381 = vmatpush1.bf16.msra.mxu0 0
        %382 = vmatprep.subr.bf16.mxu0 0
        %383 = vmatpush1.bf16.msra.mxu0 0
        %384 = vmatprep.subr.bf16.mxu0 0
        %385 = vmatpush1.bf16.msra.mxu0 0
        %386 = vmatprep.subr.bf16.mxu0 0
        %387 = vmatpush1.bf16.msra.mxu0 0
        %388 = vmatprep.subr.bf16.mxu0 0
        %389 = vmatpush1.bf16.msra.mxu0 0
        %390 = vmatprep.subr.bf16.mxu0 0
        %391 = vmatpush1.bf16.msra.mxu0 0
        %392 = vmatprep.subr.bf16.mxu0 0
        %393 = vmatpush1.bf16.msra.mxu0 0
        %394 = vmatprep.subr.bf16.mxu0 0
        %395 = vmatpush1.bf16.msra.mxu0 0
        %396 = vmatprep.subr.bf16.mxu0 0
        %397 = vmatpush1.bf16.msra.mxu0 0
        %398 = vmatprep.mubr.bf16.mxu0 0
        %399 = vmatmul.mubr.bf16.gmra.mrb[0].mxu0 %v364
        %v400 = vpop.f32.mrb[0].mxu0
        %v401 = vadd.f32 %v362, %v400
        %v402 = vpop.f32.mrb[0].mxu0
        %v403 = vpop.f32.mrb[0].mxu0
        %v404 = vpop.f32.mrb[0].mxu0
        %405 = vdwg.mxu0
        %v406 = vmul.f32 %v401, 0.5
        %v407 = vmul.f32 %v406, 1.442695
        %v408 = vpow.pop %v407
        %410 = vrot.lane.b32.xlu0 %v408, 6
        %v411 = vpop.permute.xlu0 %410
        %v413 = vmul.f32 %v233, %v411
        %415 = vrot.lane.b32.xlu0 %v413, 120
        %v416 = vpop.permute.xlu0 %415
        %v418 = vadd.f32 %v401, %v416
        %420 = vset.pattern.permute.xlu0 0
        %421 = vperm.xlu0 %420, %v418
        %v422 = vpop.permute.xlu0 %421
        %v424 = vlaneseq
        %v425 = vshrl.u32 %v424, 7
        %v426 = vsub.s32 0, %v425
        %v427 = vrot.slane %v235, %v426
        %v428 = vmul.f32 %v422, %v427
        %v429 = vlaneseq
        %v430 = vshrl.u32 %v429, 7
        %v431 = vsub.s32 2, %v430
        %v432 = vrot.slane %v235, %v431
        %v433 = vadd.f32 %v432, %v428
        %434 = vset.pattern.permute.xlu0 1
        %435 = vperm.xlu0 %434, %v418
        %v436 = vpop.permute.xlu0 %435
        %v438 = vlaneseq
        %v439 = vshrl.u32 %v438, 7
        %v440 = vsub.s32 1, %v439
        %v441 = vrot.slane %v235, %v440
        %v442 = vmul.f32 %v436, %v441
        %v443 = vadd.f32 %v433, %v442
        %v444 = vmax.f32 %v443, 0.0
        %v445 = vld [vmem:[#allocation7 + $0x50] sm:$0xff]
        %v446 = vld [vmem:[#allocation7 + $0x58] sm:$0xff]
        %v447 = vld [vmem:[#allocation7 + $0x60] sm:$0xff]
        %v448 = vld [vmem:[#allocation7 + $0x68] sm:$0xff]
        %v449 = vpack.c.bf16 %v446, %v445
        %v450 = vpack.c.bf16 %v448, %v447
        %v451 = vld [vmem:[#allocation7 + $0x70] sm:$0x1]
        %v452 = vpack.c.bf16 %v444, %v444
        %v453 = vlaneseq
        %v454 = vshrl.u32 %v453, 7
        %v455 = vsub.s32 0, %v454
        %v456 = vrot.slane %v451, %v455
        %v458 = vsel %vm306, %v452, 0
        %460 = vmatprep.subr.bf16.mxu0 0
        %461 = vmatpush1.bf16.msra.mxu0 %v449
        %462 = vmatprep.subr.bf16.mxu0 0
        %463 = vmatpush1.bf16.msra.mxu0 %v450
        %464 = vmatprep.subr.bf16.mxu0 0
        %465 = vmatpush1.bf16.msra.mxu0 0
        %466 = vmatprep.subr.bf16.mxu0 0
        %467 = vmatpush1.bf16.msra.mxu0 0
        %468 = vmatprep.subr.bf16.mxu0 0
        %469 = vmatpush1.bf16.msra.mxu0 0
        %470 = vmatprep.subr.bf16.mxu0 0
        %471 = vmatpush1.bf16.msra.mxu0 0
        %472 = vmatprep.subr.bf16.mxu0 0
        %473 = vmatpush1.bf16.msra.mxu0 0
        %474 = vmatprep.subr.bf16.mxu0 0
        %475 = vmatpush1.bf16.msra.mxu0 0
        %476 = vmatprep.subr.bf16.mxu0 0
        %477 = vmatpush1.bf16.msra.mxu0 0
        %478 = vmatprep.subr.bf16.mxu0 0
        %479 = vmatpush1.bf16.msra.mxu0 0
        %480 = vmatprep.subr.bf16.mxu0 0
        %481 = vmatpush1.bf16.msra.mxu0 0
        %482 = vmatprep.subr.bf16.mxu0 0
        %483 = vmatpush1.bf16.msra.mxu0 0
        %484 = vmatprep.subr.bf16.mxu0 0
        %485 = vmatpush1.bf16.msra.mxu0 0
        %486 = vmatprep.subr.bf16.mxu0 0
        %487 = vmatpush1.bf16.msra.mxu0 0
        %488 = vmatprep.subr.bf16.mxu0 0
        %489 = vmatpush1.bf16.msra.mxu0 0
        %490 = vmatprep.subr.bf16.mxu0 0
        %491 = vmatpush1.bf16.msra.mxu0 0
        %492 = vmatprep.mubr.bf16.mxu0 0
        %493 = vmatmul.mubr.bf16.gmra.mrb[0].mxu0 %v458
        %v494 = vpop.f32.mrb[0].mxu0
        %v495 = vadd.f32 %v456, %v494
        %v496 = vpop.f32.mrb[0].mxu0
        %v497 = vpop.f32.mrb[0].mxu0
        %v498 = vpop.f32.mrb[0].mxu0
        %499 = vdwg.mxu0
        %v500 = vmax.f32 %v495, 0.0
        %v501 = vld [vmem:[#allocation7 + $0x78] sm:$0xff]
        %v502 = vld [vmem:[#allocation7 + $0x80] sm:$0xff]
        %v503 = vld [vmem:[#allocation7 + $0x88] sm:$0xff]
        %v504 = vld [vmem:[#allocation7 + $0x90] sm:$0xff]
        %v505 = vpack.c.bf16 %v502, %v501
        %v506 = vpack.c.bf16 %v504, %v503
        %v507 = vld [vmem:[#allocation7 + $0x98] sm:$0x1]
        %v508 = vld [vmem:[#allocation7 + $0x99] sm:$0xf]
        %v509 = vpack.c.bf16 %v500, %v500
        %v510 = vlaneseq
        %v511 = vshrl.u32 %v510, 7
        %v512 = vsub.s32 0, %v511
        %v513 = vrot.slane %v507, %v512
        %v515 = vsel %vm306, %v509, 0
        %517 = vmatprep.subr.bf16.mxu0 0
        %518 = vmatpush1.bf16.msra.mxu0 %v505
        %519 = vmatprep.subr.bf16.mxu0 0
        %520 = vmatpush1.bf16.msra.mxu0 %v506
        %521 = vmatprep.subr.bf16.mxu0 0
        %522 = vmatpush1.bf16.msra.mxu0 0
        %523 = vmatprep.subr.bf16.mxu0 0
        %524 = vmatpush1.bf16.msra.mxu0 0
        %525 = vmatprep.subr.bf16.mxu0 0
        %526 = vmatpush1.bf16.msra.mxu0 0
        %527 = vmatprep.subr.bf16.mxu0 0
        %528 = vmatpush1.bf16.msra.mxu0 0
        %529 = vmatprep.subr.bf16.mxu0 0
        %530 = vmatpush1.bf16.msra.mxu0 0
        %531 = vmatprep.subr.bf16.mxu0 0
        %532 = vmatpush1.bf16.msra.mxu0 0
        %533 = vmatprep.subr.bf16.mxu0 0
        %534 = vmatpush1.bf16.msra.mxu0 0
        %535 = vmatprep.subr.bf16.mxu0 0
        %536 = vmatpush1.bf16.msra.mxu0 0
        %537 = vmatprep.subr.bf16.mxu0 0
        %538 = vmatpush1.bf16.msra.mxu0 0
        %539 = vmatprep.subr.bf16.mxu0 0
        %540 = vmatpush1.bf16.msra.mxu0 0
        %541 = vmatprep.subr.bf16.mxu0 0
        %542 = vmatpush1.bf16.msra.mxu0 0
        %543 = vmatprep.subr.bf16.mxu0 0
        %544 = vmatpush1.bf16.msra.mxu0 0
        %545 = vmatprep.subr.bf16.mxu0 0
        %546 = vmatpush1.bf16.msra.mxu0 0
        %547 = vmatprep.subr.bf16.mxu0 0
        %548 = vmatpush1.bf16.msra.mxu0 0
        %549 = vmatprep.mubr.bf16.mxu0 0
        %550 = vmatmul.mubr.bf16.gmra.mrb[0].mxu0 %v515
        %v551 = vpop.f32.mrb[0].mxu0
        %v552 = vadd.f32 %v513, %v551
        %v553 = vpop.f32.mrb[0].mxu0
        %v554 = vpop.f32.mrb[0].mxu0
        %v555 = vpop.f32.mrb[0].mxu0
        %556 = vdwg.mxu0
        %vm557 = vcmask 31744
        %v559 = vsel %vm557, %v401, 0
        %v562 = vsel %vm247, %v508, 0
        %564 = vmatprep.subr.mxu0 0.0
        %565 = vmatpush1.msra.mxu0 %v562
        %566 = vmatprep.subr.mxu0 0.0
        %567 = vmatpush1.msra.mxu0 0.0
        %568 = vmatprep.subr.mxu0 0.0
        %569 = vmatpush1.msra.mxu0 0.0
        %570 = vmatprep.subr.mxu0 0.0
        %571 = vmatpush1.msra.mxu0 0.0
        %572 = vmatprep.subr.mxu0 0.0
        %573 = vmatpush1.msra.mxu0 0.0
        %574 = vmatprep.subr.mxu0 0.0
        %575 = vmatpush1.msra.mxu0 0.0
        %576 = vmatprep.subr.mxu0 0.0
        %577 = vmatpush1.msra.mxu0 0.0
        %578 = vmatprep.subr.mxu0 0.0
        %579 = vmatpush1.msra.mxu0 0.0
        %580 = vmatprep.subr.mxu0 0.0
        %581 = vmatpush1.msra.mxu0 0.0
        %582 = vmatprep.subr.mxu0 0.0
        %583 = vmatpush1.msra.mxu0 0.0
        %584 = vmatprep.subr.mxu0 0.0
        %585 = vmatpush1.msra.mxu0 0.0
        %586 = vmatprep.subr.mxu0 0.0
        %587 = vmatpush1.msra.mxu0 0.0
        %588 = vmatprep.subr.mxu0 0.0
        %589 = vmatpush1.msra.mxu0 0.0
        %590 = vmatprep.subr.mxu0 0.0
        %591 = vmatpush1.msra.mxu0 0.0
        %592 = vmatprep.subr.mxu0 0.0
        %593 = vmatpush1.msra.mxu0 0.0
        %594 = vmatprep.subr.mxu0 0.0
        %595 = vmatpush1.msra.mxu0 0.0
        %596 = vmatprep.subr.mxu0 0.0
        %597 = vmatpush1.msra.mxu0 0.0
        %598 = vmatprep.subr.mxu0 0.0
        %599 = vmatpush1.msra.mxu0 0.0
        %600 = vmatprep.subr.mxu0 0.0
        %601 = vmatpush1.msra.mxu0 0.0
        %602 = vmatprep.subr.mxu0 0.0
        %603 = vmatpush1.msra.mxu0 0.0
        %604 = vmatprep.subr.mxu0 0.0
        %605 = vmatpush1.msra.mxu0 0.0
        %606 = vmatprep.subr.mxu0 0.0
        %607 = vmatpush1.msra.mxu0 0.0
        %608 = vmatprep.subr.mxu0 0.0
        %609 = vmatpush1.msra.mxu0 0.0
        %610 = vmatprep.subr.mxu0 0.0
        %611 = vmatpush1.msra.mxu0 0.0
        %612 = vmatprep.subr.mxu0 0.0
        %613 = vmatpush1.msra.mxu0 0.0
        %614 = vmatprep.subr.mxu0 0.0
        %615 = vmatpush1.msra.mxu0 0.0
        %616 = vmatprep.subr.mxu0 0.0
        %617 = vmatpush1.msra.mxu0 0.0
        %618 = vmatprep.subr.mxu0 0.0
        %619 = vmatpush1.msra.mxu0 0.0
        %620 = vmatprep.subr.mxu0 0.0
        %621 = vmatpush1.msra.mxu0 0.0
        %622 = vmatprep.subr.mxu0 0.0
        %623 = vmatpush1.msra.mxu0 0.0
        %624 = vmatprep.subr.mxu0 0.0
        %625 = vmatpush1.msra.mxu0 0.0
        %626 = vmatprep.subr.mxu0 0.0
        %627 = vmatpush1.msra.mxu0 0.0
        %628 = vmatprep.mubr.f32.mxu0 0.0
        %629 = vmatmul.mubr.f32.gmra.mrb[0].mxu0 %v559
        %v630 = vpop.f32.mrb[0].mxu0
        %v631 = vadd.f32 0.0, %v630
        %v632 = vpop.f32.mrb[0].mxu0
        %633 = vdwg.mxu0
        %v634 = vadd.f32 %v552, %v631
        %635 = vst [vmem:[%s226] sm:$0xff] %v634
        %s636 = sand.u32 %s111, 1
        %s637 = scalar_lea.sflag [#allocation6], %s636
        %s638 = sand.u32 %s111, 1
        %s639 = smul.addr %s638, 8
        %s640 = scalar_lea.vmem [#allocation9], %s639
        // Predicated region
        $region41: #{vae_forward_blocks.1} parent=31 // pred_check
          %p641 = pneg %p121
        $region42: #{vae_forward_blocks.1} parent=31 // pred_check_branch
          %643 = sbr.rel (%p641) target = $region44
        $region43: #{vae_forward_blocks.1} parent=31 // pred_region
          %s645 = ssub.s32 128, 128
          %646 = vsyncadd %s637, %s645
          %s647 = smul.addr %s28, 128
          %s648 = scalar_lea.hbm %s4, %s647
          %s650 = sshll.u32 %s640, 4
          %s651 = int_to_ptr.vmem [resolvable:$true] %s650
          %653 = dma.vmem_to_hbm [thread:$0]  %s651, 128, %s648, %s637
        $region44: #{vae_forward_blocks.1} parent=31 // pred_fallthru
          _
      $region32: #{vae_forward_blocks.1} parent=5 // pred_fallthru
        _
      %p654 = scmp.le.s32.totalorder 2, %s23
      // Predicated region
      $region45: #{vae_forward_blocks.1} parent=5 // pred_check
        %p655 = pneg %p654
      $region46: #{vae_forward_blocks.1} parent=5 // pred_check_branch
        %657 = sbr.rel (%p655) target = $region48
      $region47: #{vae_forward_blocks.1} parent=5 // pred_region
        %s658 = ssub.s32 %s23, 2
        // Predicated region
        $region49: #{vae_forward_blocks.1} parent=47 // pred_check
          %p659 = pneg %p127
        $region50: #{vae_forward_blocks.1} parent=47 // pred_check_branch
          %661 = sbr.rel (%p659) target = $region52
        $region51: #{vae_forward_blocks.1} parent=47 // pred_region
          %s662 = sand.u32 %s112, 1
          %s663 = scalar_lea.sflag [#allocation6], %s662
          %s664 = sand.u32 %s112, 1
          %s665 = smul.addr %s664, 8
          %s666 = scalar_lea.vmem [#allocation9], %s665
          %667 = dma.done %s663, 128
        $region52: #{vae_forward_blocks.1} parent=47 // pred_fallthru
          _
      $region48: #{vae_forward_blocks.1} parent=5 // pred_fallthru
        _
    $region6: #{vae_forward_blocks.1} parent=1 // loop_footer
      %s27 = sadd.s32 1, %s23
    $region7: #{vae_forward_blocks.1} parent=1 // loop_footer_branch
      %22 = sbr.rel target = $region3
    $region8: #{vae_forward_blocks.1} parent=1 // loop_exit
      _
    %668 = vsyncpa [#allocation5], 1
    %s669 = scalar_lea.sflag [#allocation5], 1
    %670 = vsyncpa %s669, 1
    %671 = vsyncpa [#allocation8], 1
    %672 = vsyncpa [#allocation6], 1
    %s673 = scalar_lea.sflag [#allocation6], 1
    %674 = vsyncpa %s673, 1

</llo_original>
